<compile_context>
chip_gen: v5e
topology: v5e:2x2
jax: 0.10.0
libtpu: 0.0.40
codegen_flags: <defaults>
</compile_context>

<pallas_src>
import jax
import jax.numpy as jnp
from jax import lax
from jax.experimental import pallas as pl
from jax.experimental.pallas import tpu as pltpu


def _round_up(x, m):
    return ((x + m - 1) // m) * m


def cond_embedding_kernel(cond_ref, w1_ref, b1_ref, g1_ref, be1_ref,
                          w2_ref, b2_ref, out_ref, table_ref):
    """Fused ConditionalEmbedding forward via a 3-row precomputed table."""

    @pl.when(pl.program_id(0) == 0)
    def _build_table():
        # Only 3 distinct inputs exist; build an (8, dim_p) table (rows 0/1/2
        # used, rows 3..7 are harmless padding that is never selected).
        w1 = w1_ref[...]                                      # (2, 32)
        # fc1 on the VPU: inputs are +-0.5 (or 0), so
        #   x @ W1 = sign * 0.5*(W1[0] - W1[1])
        # which avoids a degenerate (B,2)x(2,32) MXU matmul entirely.
        d = 0.5 * (w1[0:1, :] - w1[1:2, :])                   # (1, 32)
        rid = lax.broadcasted_iota(jnp.int32, (8, 32), 0)     # table row id
        sign = jnp.where(rid == 0, 1.0,
                         jnp.where(rid == 1, -1.0, 0.0)).astype(jnp.float32)
        h = sign * d + b1_ref[...]                            # (8, 32)

        # LayerNorm over the 32-wide feature dim (eps = 1e-5, PyTorch default).
        mean = jnp.mean(h, axis=-1, keepdims=True)
        var = jnp.mean((h - mean) ** 2, axis=-1, keepdims=True)
        hn = (h - mean) * lax.rsqrt(var + 1e-5)
        hn = hn * g1_ref[...] + be1_ref[...]

        # Mish: x * tanh(softplus(x)) — only 8x32 elements, EUP cost is trivial.
        m = hn * jnp.tanh(jax.nn.softplus(hn))

        # fc2: (8, 32) @ (32, dim_p) + b2 -> lane-dense table.  Runs once per
        # call, so operands stay f32 (bf16 would only cost accuracy).
        table_ref[...] = (jnp.dot(m, w2_ref[...],
                                  preferred_element_type=jnp.float32)
                          + b2_ref[...])

    # Per-batch-row work: pick one of the 3 precomputed dim-wide rows.
    c = cond_ref[...]                                         # (TB, 1) int32
    row0 = table_ref[0:1, :]                                  # cond == 0
    row1 = table_ref[1:2, :]                                  # cond == 1
    row2 = table_ref[2:3, :]                                  # anything else
    out_ref[...] = jnp.where(c == 0, row0, jnp.where(c == 1, row1, row2))


def conditional_embedding(cond, params, dim, *, batch_tile=512):
    """cond: (B,) integer labels. Returns (B, dim) float32."""
    B = cond.shape[0]
    dim_p = _round_up(dim, 128)                 # lane-dense output stores

    # Batch tile: biggest tile up to `batch_tile`, but shrink if it would force
    # excessive padded-row writes (the kernel is HBM-write bound).
    tb = min(batch_tile, _round_up(B, 8))
    while tb > 8 and _round_up(B, tb) - B >= tb // 2:
        tb = _round_up(tb // 2, 8)
    b_pad = _round_up(B, tb)

    cond2d = cond.reshape(B, 1).astype(jnp.int32)
    if b_pad != B:
        cond2d = jnp.pad(cond2d, ((0, b_pad - B), (0, 0)))

    w2, b2 = params["w2"], params["b2"]
    if dim_p != dim:
        w2 = jnp.pad(w2, ((0, 0), (0, dim_p - dim)))
        b2 = jnp.pad(b2, ((0, 0), (0, dim_p - dim)))

    def const_spec(shape):
        # Same block every grid step -> weights stay VMEM-resident (no re-DMA).
        return pl.BlockSpec(shape, lambda i: (0, 0))

    out = pl.pallas_call(
        cond_embedding_kernel,
        out_shape=jax.ShapeDtypeStruct((b_pad, dim_p), jnp.float32),
        grid_spec=pltpu.PrefetchScalarGridSpec(
            num_scalar_prefetch=0,
            grid=(b_pad // tb,),
            in_specs=[
                pl.BlockSpec((tb, 1), lambda i: (i, 0)),   # cond tile
                const_spec((2, 32)),                        # w1
                const_spec((1, 32)),                        # b1
                const_spec((1, 32)),                        # gamma1
                const_spec((1, 32)),                        # beta1
                const_spec((32, dim_p)),                    # w2 (padded)
                const_spec((1, dim_p)),                     # b2 (padded)
            ],
            out_specs=pl.BlockSpec((tb, dim_p), lambda i: (i, 0)),
            scratch_shapes=[pltpu.VMEM((8, dim_p), jnp.float32)],
        ),
        compiler_params=pltpu.CompilerParams(
            # "arbitrary": the table built at program_id 0 is reused by later
            # steps, which needs the sequential-grid guarantee (megacore
            # sharding would skip pid==0 on the second core).  The kernel is
            # HBM-write bound, so losing megacore costs ~nothing.
            dimension_semantics=("arbitrary",),
        ),
    )(cond2d, params["w1"], params["b1"], params["g1"], params["be1"], w2, b2)

    return out[:B, :dim]


def init_params(key, dim):
    k1, k2, k3, k4 = jax.random.split(key, 4)
    return {
        # fc1: Linear(2, 32) — stored as (in, out)
        "w1": jax.random.normal(k1, (2, 32), jnp.float32) * 0.5,
        "b1": jax.random.normal(k2, (1, 32), jnp.float32) * 0.1,
        # layer_norm1 affine params (perturbed so the test exercises them)
        "g1": jnp.ones((1, 32), jnp.float32) * 1.1,
        "be1": jnp.full((1, 32), 0.05, jnp.float32),
        # fc2: Linear(32, dim)
        "w2": jax.random.normal(k3, (32, dim), jnp.float32) * 0.2,
        "b2": jax.random.normal(k4, (1, dim), jnp.float32) * 0.1,
    }
    # note: layer_norm2 from __init__ is unused in forward(), so it is omitted.


def reference(cond, params):
    """Plain-JAX reference of the PyTorch forward."""
    c = cond.astype(jnp.int32)[:, None]
    col = jnp.arange(2)[None, :]
    sign = jnp.where(col == 0, 0.5, -0.5).astype(jnp.float32)
    x = jnp.where(c == 0, sign, jnp.where(c == 1, -sign, 0.0))
    h = x @ params["w1"] + params["b1"]
    mean = h.mean(-1, keepdims=True)
    var = ((h - mean) ** 2).mean(-1, keepdims=True)
    hn = (h - mean) / jnp.sqrt(var + 1e-5) * params["g1"] + params["be1"]
    m = hn * jnp.tanh(jax.nn.softplus(hn))
    return m @ params["w2"] + params["b2"]


if __name__ == "__main__":
    B, DIM = 8, 64
    key = jax.random.PRNGKey(0)
    kc, kp = jax.random.split(key)

    # Labels in {0, 1, 2}: exercises the cond==0 / cond==1 / "else -> zeros"
    # branches of the original const() lookup.
    cond = jax.random.randint(kc, (B,), 0, 3, dtype=jnp.int32)
    params = init_params(kp, DIM)

    out = conditional_embedding(cond, params, DIM)
    out = jax.block_until_ready(out)

    ref = reference(cond, params)
    assert out.shape == (B, DIM)
    assert jnp.allclose(out, ref, atol=2e-5, rtol=2e-5), "mismatch vs reference"
    print("KERNEL_OK")
</pallas_src>

<mosaic_0001>
module attributes {stable_mosaic.version = 11 : i64} {
  func.func @cond_embedding_kernel(%arg0: i32, %arg1: memref<8x1xi32, #tpu.memory_space<vmem>>, %arg2: memref<2x32xf32, #tpu.memory_space<vmem>>, %arg3: memref<1x32xf32, #tpu.memory_space<vmem>>, %arg4: memref<1x32xf32, #tpu.memory_space<vmem>>, %arg5: memref<1x32xf32, #tpu.memory_space<vmem>>, %arg6: memref<32x128xf32, #tpu.memory_space<vmem>>, %arg7: memref<1x128xf32, #tpu.memory_space<vmem>>, %arg8: memref<8x128xf32, #tpu.memory_space<vmem>>, %arg9: memref<8x128xf32, #tpu.memory_space<vmem>>) attributes {dimension_semantics = [#tpu.dimension_semantics<arbitrary>], iteration_bounds = array<i64: 1>, scalar_prefetch = 0 : i64, scratch_operands = 1 : i64, tpu.core_type = #tpu.core_type<tc>, window_params = [{transform_indices = @transform_0, window_bounds = array<i64: 8, 1>}, {pipeline_mode = #tpu.pipeline_mode<synchronous>, transform_indices = @transform_1, window_bounds = array<i64: 2, 32>}, {pipeline_mode = #tpu.pipeline_mode<synchronous>, transform_indices = @transform_2, window_bounds = array<i64: 1, 32>}, {pipeline_mode = #tpu.pipeline_mode<synchronous>, transform_indices = @transform_3, window_bounds = array<i64: 1, 32>}, {pipeline_mode = #tpu.pipeline_mode<synchronous>, transform_indices = @transform_4, window_bounds = array<i64: 1, 32>}, {pipeline_mode = #tpu.pipeline_mode<synchronous>, transform_indices = @transform_5, window_bounds = array<i64: 32, 128>}, {pipeline_mode = #tpu.pipeline_mode<synchronous>, transform_indices = @transform_6, window_bounds = array<i64: 1, 128>}, {transform_indices = @transform_7, window_bounds = array<i64: 8, 128>}]} {
    %c0_i32 = arith.constant 0 : i32
    %0 = arith.cmpi eq, %arg0, %c0_i32 : i32
    %1 = arith.extui %0 : i1 to i32
    %c0_i32_0 = arith.constant 0 : i32
    %2 = arith.cmpi ne, %1, %c0_i32_0 : i32
    scf.if %2 {
      %c0_9 = arith.constant 0 : index
      %c0_10 = arith.constant 0 : index
      %24 = vector.load %arg2[%c0_9, %c0_10] : memref<2x32xf32, #tpu.memory_space<vmem>>, vector<2x32xf32>
      %25 = vector.extract_strided_slice %24 {offsets = [0, 0], sizes = [1, 32], strides = [1, 1]} : vector<2x32xf32> to vector<1x32xf32>
      %26 = vector.extract_strided_slice %24 {offsets = [1, 0], sizes = [1, 32], strides = [1, 1]} : vector<2x32xf32> to vector<1x32xf32>
      %27 = arith.subf %25, %26 : vector<1x32xf32>
      %cst = arith.constant 5.000000e-01 : f32
      %28 = vector.broadcast %cst : f32 to vector<1x32xf32>
      %29 = arith.mulf %28, %27 : vector<1x32xf32>
      %30 = tpu.iota {dimensions = array<i32: 0>} : vector<8x32xi32>
      %c0_i32_11 = arith.constant 0 : i32
      %31 = vector.broadcast %c0_i32_11 : i32 to vector<8x32xi32>
      %32 = arith.cmpi eq, %30, %31 : vector<8x32xi32>
      %c1_i32_12 = arith.constant 1 : i32
      %33 = vector.broadcast %c1_i32_12 : i32 to vector<8x32xi32>
      %34 = arith.cmpi eq, %30, %33 : vector<8x32xi32>
      %cst_13 = arith.constant -1.000000e+00 : f32
      %cst_14 = arith.constant 0.000000e+00 : f32
      %35 = vector.broadcast %cst_13 : f32 to vector<8x32xf32>
      %36 = vector.broadcast %cst_14 : f32 to vector<8x32xf32>
      %37 = arith.select %34, %35, %36 : vector<8x32xi1>, vector<8x32xf32>
      %cst_15 = arith.constant 1.000000e+00 : f32
      %38 = vector.broadcast %cst_15 : f32 to vector<8x32xf32>
      %39 = arith.select %32, %38, %37 : vector<8x32xi1>, vector<8x32xf32>
      %40 = vector.broadcast %29 : vector<1x32xf32> to vector<8x32xf32>
      %41 = arith.mulf %39, %40 : vector<8x32xf32>
      %c0_16 = arith.constant 0 : index
      %c0_17 = arith.constant 0 : index
      %42 = vector.load %arg3[%c0_16, %c0_17] : memref<1x32xf32, #tpu.memory_space<vmem>>, vector<1x32xf32>
      %43 = vector.broadcast %42 : vector<1x32xf32> to vector<8x32xf32>
      %44 = arith.addf %41, %43 : vector<8x32xf32>
      %cst_18 = arith.constant dense<0.000000e+00> : vector<8xf32>
      %45 = vector.multi_reduction <add>, %44, %cst_18 [1] : vector<8x32xf32> to vector<8xf32>
      %46 = vector.shape_cast %45 : vector<8xf32> to vector<8x1xf32>
      %cst_19 = arith.constant 3.200000e+01 : f32
      %47 = vector.broadcast %cst_19 : f32 to vector<8x1xf32>
      %48 = arith.divf %46, %47 : vector<8x1xf32>
      %49 = vector.broadcast %48 : vector<8x1xf32> to vector<8x32xf32>
      %50 = arith.subf %44, %49 : vector<8x32xf32>
      %51 = arith.mulf %50, %50 : vector<8x32xf32>
      %cst_20 = arith.constant dense<0.000000e+00> : vector<8xf32>
      %52 = vector.multi_reduction <add>, %51, %cst_20 [1] : vector<8x32xf32> to vector<8xf32>
      %53 = vector.shape_cast %52 : vector<8xf32> to vector<8x1xf32>
      %cst_21 = arith.constant 3.200000e+01 : f32
      %54 = vector.broadcast %cst_21 : f32 to vector<8x1xf32>
      %55 = arith.divf %53, %54 : vector<8x1xf32>
      %56 = vector.broadcast %48 : vector<8x1xf32> to vector<8x32xf32>
      %57 = arith.subf %44, %56 : vector<8x32xf32>
      %cst_22 = arith.constant 9.99999974E-6 : f32
      %58 = vector.broadcast %cst_22 : f32 to vector<8x1xf32>
      %59 = arith.addf %55, %58 : vector<8x1xf32>
      %60 = math.rsqrt %59 : vector<8x1xf32>
      %61 = vector.broadcast %60 : vector<8x1xf32> to vector<8x32xf32>
      %62 = arith.mulf %57, %61 : vector<8x32xf32>
      %c0_23 = arith.constant 0 : index
      %c0_24 = arith.constant 0 : index
      %63 = vector.load %arg4[%c0_23, %c0_24] : memref<1x32xf32, #tpu.memory_space<vmem>>, vector<1x32xf32>
      %64 = vector.broadcast %63 : vector<1x32xf32> to vector<8x32xf32>
      %65 = arith.mulf %62, %64 : vector<8x32xf32>
      %c0_25 = arith.constant 0 : index
      %c0_26 = arith.constant 0 : index
      %66 = vector.load %arg5[%c0_25, %c0_26] : memref<1x32xf32, #tpu.memory_space<vmem>>, vector<1x32xf32>
      %67 = vector.broadcast %66 : vector<1x32xf32> to vector<8x32xf32>
      %68 = arith.addf %65, %67 : vector<8x32xf32>
      %cst_27 = arith.constant 0.000000e+00 : f32
      %69 = vector.broadcast %cst_27 : f32 to vector<8x32xf32>
      %70 = arith.maximumf %68, %69 : vector<8x32xf32>
      %71 = vector.broadcast %cst_27 : f32 to vector<8x32xf32>
      %72 = arith.subf %68, %71 : vector<8x32xf32>
      %73 = arith.cmpf one, %72, %72 : vector<8x32xf32>
      %74 = vector.broadcast %cst_27 : f32 to vector<8x32xf32>
      %75 = arith.addf %68, %74 : vector<8x32xf32>
      %76 = math.absf %72 : vector<8x32xf32>
      %cst_28 = arith.constant 0.000000e+00 : f32
      %77 = vector.broadcast %cst_28 : f32 to vector<8x32xf32>
      %78 = arith.subf %77, %76 : vector<8x32xf32>
      %79 = math.exp %78 : vector<8x32xf32>
      %80 = math.log1p %79 : vector<8x32xf32>
      %81 = arith.addf %70, %80 : vector<8x32xf32>
      %82 = arith.select %73, %75, %81 : vector<8x32xi1>, vector<8x32xf32>
      %83 = math.tanh %82 : vector<8x32xf32>
      %84 = arith.mulf %68, %83 : vector<8x32xf32>
      %c0_29 = arith.constant 0 : index
      %c0_30 = arith.constant 0 : index
      %85 = vector.load %arg6[%c0_29, %c0_30] : memref<32x128xf32, #tpu.memory_space<vmem>>, vector<32x128xf32>
      %cst_31 = arith.constant dense<0.000000e+00> : vector<8x128xf32>
      %86 = tpu.matmul %84, %85, %cst_31 {dimension_numbers = #tpu.dot_dimension_numbers<[1], [0], [0], [1], [0, 0, 1, 1], [], []>} : vector<8x32xf32>, vector<32x128xf32>, vector<8x128xf32> -> vector<8x128xf32>
      %c0_32 = arith.constant 0 : index
      %c0_33 = arith.constant 0 : index
      %87 = vector.load %arg7[%c0_32, %c0_33] : memref<1x128xf32, #tpu.memory_space<vmem>>, vector<1x128xf32>
      %88 = vector.broadcast %87 : vector<1x128xf32> to vector<8x128xf32>
      %89 = arith.addf %86, %88 : vector<8x128xf32>
      %c0_34 = arith.constant 0 : index
      %c0_35 = arith.constant 0 : index
      %90 = vector.load %arg9[%c0_34, %c0_35] : memref<8x128xf32, #tpu.memory_space<vmem>>, vector<8x128xf32>
      tpu.vector_store %arg9[%c0_34, %c0_35], %89 {strides = array<i32>} : memref<8x128xf32, #tpu.memory_space<vmem>>, vector<8x128xf32>,
    } else {
    }
    %c0 = arith.constant 0 : index
    %c0_1 = arith.constant 0 : index
    %3 = vector.load %arg1[%c0, %c0_1] : memref<8x1xi32, #tpu.memory_space<vmem>>, vector<8x1xi32>
    %c0_2 = arith.constant 0 : index
    %c0_3 = arith.constant 0 : index
    %4 = vector.load %arg9[%c0_2, %c0_3] : memref<8x128xf32, #tpu.memory_space<vmem>>, vector<1x128xf32>
    %c1 = arith.constant 1 : index
    %c0_4 = arith.constant 0 : index
    %5 = vector.load %arg9[%c1, %c0_4] : memref<8x128xf32, #tpu.memory_space<vmem>>, vector<1x128xf32>
    %c2 = arith.constant 2 : index
    %c0_5 = arith.constant 0 : index
    %6 = vector.load %arg9[%c2, %c0_5] : memref<8x128xf32, #tpu.memory_space<vmem>>, vector<1x128xf32>
    %c0_i32_6 = arith.constant 0 : i32
    %7 = vector.broadcast %c0_i32_6 : i32 to vector<8x1xi32>
    %8 = arith.cmpi eq, %3, %7 : vector<8x1xi32>
    %c1_i32 = arith.constant 1 : i32
    %9 = vector.broadcast %c1_i32 : i32 to vector<8x1xi32>
    %10 = arith.cmpi eq, %3, %9 : vector<8x1xi32>
    %11 = vector.shape_cast %10 : vector<8x1xi1> to vector<8x1xi1>
    %12 = vector.broadcast %11 : vector<8x1xi1> to vector<8x128xi1>
    %13 = vector.shape_cast %5 : vector<1x128xf32> to vector<1x128xf32>
    %14 = vector.broadcast %13 : vector<1x128xf32> to vector<8x128xf32>
    %15 = vector.shape_cast %6 : vector<1x128xf32> to vector<1x128xf32>
    %16 = vector.broadcast %15 : vector<1x128xf32> to vector<8x128xf32>
    %17 = arith.select %12, %14, %16 : vector<8x128xi1>, vector<8x128xf32>
    %18 = vector.shape_cast %8 : vector<8x1xi1> to vector<8x1xi1>
    %19 = vector.broadcast %18 : vector<8x1xi1> to vector<8x128xi1>
    %20 = vector.shape_cast %4 : vector<1x128xf32> to vector<1x128xf32>
    %21 = vector.broadcast %20 : vector<1x128xf32> to vector<8x128xf32>
    %22 = arith.select %19, %21, %17 : vector<8x128xi1>, vector<8x128xf32>
    %c0_7 = arith.constant 0 : index
    %c0_8 = arith.constant 0 : index
    %23 = vector.load %arg8[%c0_7, %c0_8] : memref<8x128xf32, #tpu.memory_space<vmem>>, vector<8x128xf32>
    tpu.vector_store %arg8[%c0_7, %c0_8], %22 {strides = array<i32>} : memref<8x128xf32, #tpu.memory_space<vmem>>, vector<8x128xf32>,
    return
  }
  func.func @transform_0(%arg0: i32) -> (i32, i32) {
    %c0_i32 = arith.constant 0 : i32
    %c0_i32_0 = arith.constant 0 : i32
    return %arg0, %c0_i32 : i32, i32
  }
  func.func @transform_1(%arg0: i32) -> (i32, i32) {
    %c0_i32 = arith.constant 0 : i32
    %c0_i32_0 = arith.constant 0 : i32
    %c0_i32_1 = arith.constant 0 : i32
    return %c0_i32, %c0_i32_0 : i32, i32
  }
  func.func @transform_2(%arg0: i32) -> (i32, i32) {
    %c0_i32 = arith.constant 0 : i32
    %c0_i32_0 = arith.constant 0 : i32
    %c0_i32_1 = arith.constant 0 : i32
    return %c0_i32, %c0_i32_0 : i32, i32
  }
  func.func @transform_3(%arg0: i32) -> (i32, i32) {
    %c0_i32 = arith.constant 0 : i32
    %c0_i32_0 = arith.constant 0 : i32
    %c0_i32_1 = arith.constant 0 : i32
    return %c0_i32, %c0_i32_0 : i32, i32
  }
  func.func @transform_4(%arg0: i32) -> (i32, i32) {
    %c0_i32 = arith.constant 0 : i32
    %c0_i32_0 = arith.constant 0 : i32
    %c0_i32_1 = arith.constant 0 : i32
    return %c0_i32, %c0_i32_0 : i32, i32
  }
  func.func @transform_5(%arg0: i32) -> (i32, i32) {
    %c0_i32 = arith.constant 0 : i32
    %c0_i32_0 = arith.constant 0 : i32
    %c0_i32_1 = arith.constant 0 : i32
    return %c0_i32, %c0_i32_0 : i32, i32
  }
  func.func @transform_6(%arg0: i32) -> (i32, i32) {
    %c0_i32 = arith.constant 0 : i32
    %c0_i32_0 = arith.constant 0 : i32
    %c0_i32_1 = arith.constant 0 : i32
    return %c0_i32, %c0_i32_0 : i32, i32
  }
  func.func @transform_7(%arg0: i32) -> (i32, i32) {
    %c0_i32 = arith.constant 0 : i32
    %c0_i32_0 = arith.constant 0 : i32
    return %arg0, %c0_i32 : i32, i32
  }
}

</mosaic_0001>

<llo_original>
// kernel: tpu_custom_call.1
$region0: #{tpu_custom_call.1}
  #allocation0 [shape = 'u32[]', space=smem, size = 0x4, offset = 0x4, fixed_abs, tag = 'smem constant byte address 0x4 - core index']
  #allocation1 [shape = 'u32[72,128]{1,0:T(1,128)}', space=vmem, size = 0x9000, scoped, tag = 'internal scratch']
  #allocation2 [shape = 'f32[8,128]{1,0:T(8,128)}', space=vmem, size = 0x1000, scoped, tag = 'scratch operand']
  %s0 = inlined_call_operand.vmem [shape: s32[8,1], index: 0, kind: input, shape index: {}]
  %s1 = inlined_call_operand.vmem [shape: f32[2,32], index: 1, kind: input, shape index: {}]
  %s2 = inlined_call_operand.vmem [shape: f32[1,32], index: 2, kind: input, shape index: {}]
  %s3 = inlined_call_operand.vmem [shape: f32[1,32], index: 3, kind: input, shape index: {}]
  %s4 = inlined_call_operand.vmem [shape: f32[1,32], index: 4, kind: input, shape index: {}]
  %s5 = inlined_call_operand.hbm [shape: f32[32,128], index: 5, kind: input, shape index: {}]
  %s6 = inlined_call_operand.vmem [shape: f32[1,128], index: 6, kind: input, shape index: {}]
  %s7 = inlined_call_operand.hbm [shape: f32[8,128], index: 7, kind: output, shape index: {}]
  %s8 = sld [smem:[#allocation0]]
  $region46: #{tpu_custom_call.1} parent=0
    _
  %s10 = ssub.s32 1, %s8
  %s11 = scalar_select 0, %s10, %s8
  $region1: #{tpu_custom_call.1} parent=0
    #allocation3 [shape = 'u8[16384]{0}', space=vmem, size = 0x4000, scoped, tag = 'input window, operand 5, single buffered']
    #allocation4 [shape = 's32[1]{0}', space=sflag, size = 0x4, scoped, tag = 'scoped memory for tpu_custom_call.1']
    #allocation5 [shape = 's32[1]{0}', space=sflag, size = 0x4, scoped, tag = 'scoped memory for tpu_custom_call.1']
    #allocation6 [shape = 'u8[4096]{0}', space=vmem, size = 0x1000, scoped, tag = 'output window, operand 0, single buffered']
    %12 = vsyncpa [#allocation4], 0
    %13 = vsyncpa [#allocation5], 0
    // Predicated region
    $region2: #{tpu_custom_call.1} parent=1 // pred_check
      _
    $region3: #{tpu_custom_call.1} parent=1 // pred_check_branch
      %15 = sbr.rel (0) target = $region5
    $region4: #{tpu_custom_call.1} parent=1 // pred_region
      _
    $region5: #{tpu_custom_call.1} parent=1 // pred_fallthru
      _
    // Predicated region
    $region6: #{tpu_custom_call.1} parent=1 // pred_check
      _
    $region7: #{tpu_custom_call.1} parent=1 // pred_check_branch
      %17 = sbr.rel (0) target = $region9
    $region8: #{tpu_custom_call.1} parent=1 // pred_region
      _
    $region9: #{tpu_custom_call.1} parent=1 // pred_fallthru
      _
    // Predicated region
    $region10: #{tpu_custom_call.1} parent=1 // pred_check
      _
    $region11: #{tpu_custom_call.1} parent=1 // pred_check_branch
      %19 = sbr.rel (0) target = $region13
    $region12: #{tpu_custom_call.1} parent=1 // pred_region
      _
    $region13: #{tpu_custom_call.1} parent=1 // pred_fallthru
      _
    // Predicated region
    $region14: #{tpu_custom_call.1} parent=1 // pred_check
      _
    $region15: #{tpu_custom_call.1} parent=1 // pred_check_branch
      %21 = sbr.rel (0) target = $region17
    $region16: #{tpu_custom_call.1} parent=1 // pred_region
      _
    $region17: #{tpu_custom_call.1} parent=1 // pred_fallthru
      _
    // Predicated region
    $region18: #{tpu_custom_call.1} parent=1 // pred_check
      _
    $region19: #{tpu_custom_call.1} parent=1 // pred_check_branch
      %23 = sbr.rel (0) target = $region21
    $region20: #{tpu_custom_call.1} parent=1 // pred_region
      _
    $region21: #{tpu_custom_call.1} parent=1 // pred_fallthru
      _
    // Predicated region
    $region22: #{tpu_custom_call.1} parent=1 // pred_check
      _
    $region23: #{tpu_custom_call.1} parent=1 // pred_check_branch
      %25 = sbr.rel (0) target = $region25
    $region24: #{tpu_custom_call.1} parent=1 // pred_region
      %27 = vsyncadd [#allocation4], 0
      %s28 = sshll.u32 %s5, 4
      %s29 = int_to_ptr.hbm [resolvable:$true] %s28
      %s30 = sshll.u32 [#allocation3], 4
      %s31 = int_to_ptr.vmem [resolvable:$true] %s30
      %36 = dma.hbm_to_vmem [thread:$0]  %s29, 512, %s31, [#allocation4], 128, 128, 8
    $region25: #{tpu_custom_call.1} parent=1 // pred_fallthru
      _
    // Predicated region
    $region26: #{tpu_custom_call.1} parent=1 // pred_check
      _
    $region27: #{tpu_custom_call.1} parent=1 // pred_check_branch
      %38 = sbr.rel (0) target = $region29
    $region28: #{tpu_custom_call.1} parent=1 // pred_region
      _
    $region29: #{tpu_custom_call.1} parent=1 // pred_fallthru
      _
    // Predicated region
    $region30: #{tpu_custom_call.1} parent=1 // pred_check
      _
    $region31: #{tpu_custom_call.1} parent=1 // pred_check_branch
      %40 = sbr.rel (0) target = $region33
    $region32: #{tpu_custom_call.1} parent=1 // pred_region
      %42 = dma.done [#allocation4], 512
    $region33: #{tpu_custom_call.1} parent=1 // pred_fallthru
      _
    %p43 = scmp.eq.s32.totalorder 0, 0
    // Predicated region
    $region34: #{tpu_custom_call.1} parent=1 // pred_check
      %p44 = pneg %p43
    $region35: #{tpu_custom_call.1} parent=1 // pred_check_branch
      %46 = sbr.rel (%p44) target = $region37
    $region36: #{tpu_custom_call.1} parent=1 // pred_region
      %v47 = vld [vmem:[%s1] sm:$0x3]
      %v49 = vrot.slane %v47, 1
      %v51 = vsub.f32 %v47, %v49
      %v52 = vmul.f32 %v51, 0.5
      %v53 = vlaneseq
      %v54 = vshrl.u32 %v53, 7
      %vm55 = vcmp.eq.s32.totalorder %v54, 0
      %vm56 = vcmp.eq.s32.totalorder %v54, 1
      %v57 = vsel %vm56, -1.0, 0.0
      %v58 = vsel %vm55, 1.0, %v57
      %v59 = vperm.slane %v52, 0
      %v60 = vmul.f32 %v58, %v59
      %v61 = vld [vmem:[%s2] sm:$0x1]
      %v63 = vperm.slane %v61, 0
      %v65 = vadd.f32 %v60, %v63
      %vm66 = vcmask 261120
      %v67 = vsel %vm66, %v65, 0.0
      %68 = vadd.xlane.f32.xlu0 %v67
      %v69 = vpop.xlane.xlu0 %68
      %v70 = vrcp.pop 32.0
      %v71 = vmul.f32 32.0, %v70
      %v72 = vsub.f32 1.0, %v71
      %v73 = vmul.f32 %v70, %v72
      %v74 = vadd.f32 %v70, %v73
      %vm75 = vweird.f32 %v70
      %v76 = vsel %vm75, %v70, %v74
      %v77 = vmul.f32 %v69, %v76
      %v78 = vsub.f32 %v65, %v77
      %v79 = vmul.f32 %v78, %v78
      %v80 = vsel %vm66, %v79, 0.0
      %81 = vadd.xlane.f32.xlu0 %v80
      %v82 = vpop.xlane.xlu0 %81
      %v83 = vmul.f32 %v82, %v76
      %v84 = vadd.f32 %v83, 1e-05
      %v85 = vrsqrt.pop %v84
      %v86 = vmul.f32 %v85, %v84
      %v87 = vmul.f32 %v86, %v85
      %v88 = vmul.f32 0.5, %v87
      %v89 = vsub.f32 1.5, %v88
      %v90 = vmul.f32 %v85, %v89
      %vm91 = vweird.f32 %v84
      %vm92 = vweird.f32 %v85
      %vm93 = vmor %vm91, %vm92
      %v94 = vsel %vm93, %v85, %v90
      %v95 = vmul.f32 %v78, %v94
      %v96 = vld [vmem:[%s3] sm:$0x1]
      %v98 = vperm.slane %v96, 0
      %v100 = vmul.f32 %v95, %v98
      %v101 = vld [vmem:[%s4] sm:$0x1]
      %v103 = vperm.slane %v101, 0
      %v105 = vadd.f32 %v100, %v103
      %v106 = vmax.f32 %v105, 0.0
      %vm107 = vcmp.ne.f32.partialorder %v105, %v105
      %v108 = vadd.f32 %v105, 0.0
      %v109 = vand.u32 2147483647, %v105
      %v110 = vsub.f32 0.0, %v109
      %v111 = vmul.f32 %v110, 1.442695
      %v112 = vpow.pop %v111
      %v113 = vadd.f32 %v112, 1.0
      %v114 = vlog2.pop %v113
      %v115 = vmul.f32 %v114, 0.6931472
      %v116 = vmul.f32 -0.5, %v112
      %v117 = vadd.f32 %v116, 1.0
      %v118 = vmul.f32 %v117, %v112
      %v119 = vand.u32 2147483647, %v112
      %vm120 = vcmp.lt.f32.partialorder %v119, 0.0004427343
      %v121 = vsel %vm120, %v118, %v115
      %v122 = vadd.f32 %v106, %v121
      %v123 = vsel %vm107, %v108, %v122
      %v124 = vtanh.pop %v123
      %v125 = vmul.f32 %v105, %v124
      %v126 = vld [vmem:[#allocation3] sm:$0xff]
      %v127 = vld [vmem:[#allocation3 + $0x8] sm:$0xff]
      %v128 = vld [vmem:[#allocation3 + $0x10] sm:$0xff]
      %v129 = vld [vmem:[#allocation3 + $0x18] sm:$0xff]
      %v130 = vld [vmem:[%s6] sm:$0x1]
      %v132 = vperm.slane %v130, 0
      %v135 = vsel %vm66, %v125, 0
      %137 = vmatpush.msra.mxu0 0.0
      %138 = vmatpush.msra.mxu0 0.0
      %139 = vmatpush.msra.mxu0 0.0
      %140 = vmatpush.msra.mxu0 0.0
      %141 = vmatpush.msra.mxu0 0.0
      %142 = vmatpush.msra.mxu0 0.0
      %143 = vmatpush.msra.mxu0 0.0
      %144 = vmatpush.msra.mxu0 0.0
      %145 = vmatpush.msra.mxu0 0.0
      %146 = vmatpush.msra.mxu0 0.0
      %147 = vmatpush.msra.mxu0 0.0
      %148 = vmatpush.msra.mxu0 0.0
      %149 = vmatpush.msra.mxu0 %v129
      %150 = vmatpush.msra.mxu0 %v128
      %151 = vmatpush.msra.mxu0 %v127
      %152 = vmatpush.msra.mxu0 %v126
      %153 = vmatmul.f32.gmra.mxu0 %v135
      %v154 = vpop.f32.mrf.mxu0
      %v155 = vadd.f32 %v132, %v154
      %156 = vdwg.mxu0
      %157 = vst [vmem:[#allocation2] sm:$0xff] %v155
    $region37: #{tpu_custom_call.1} parent=1 // pred_fallthru
      _
    %v158 = vld [vmem:[%s0] sm:$0xff]
    %v159 = vld [vmem:[#allocation2] sm:$0x1]
    %v160 = vld [vmem:[#allocation2 + $0x1] sm:$0x1]
    %v161 = vld [vmem:[#allocation2 + $0x2] sm:$0x1]
    %vm162 = vcmp.eq.s32.totalorder %v158, 0
    %vm163 = vcmp.eq.s32.totalorder %v158, 1
    %v164 = vsel %vm163, 1, 0
    %165 = vset.pattern.permute.xlu0 0
    %166 = vperm.xlu0 %165, %v164
    %v167 = vpop.permute.xlu0 %166
    %vm168 = vcmp.eq.s32.totalorder %v167, 1
    %v169 = vperm.slane %v160, 0
    %v170 = vperm.slane %v161, 0
    %v171 = vsel %vm168, %v169, %v170
    %v172 = vsel %vm162, 1, 0
    %173 = vset.pattern.permute.xlu0 0
    %174 = vperm.xlu0 %173, %v172
    %v175 = vpop.permute.xlu0 %174
    %vm176 = vcmp.eq.s32.totalorder %v175, 1
    %v177 = vperm.slane %v159, 0
    %v178 = vsel %vm176, %v177, %v171
    %179 = vst [vmem:[#allocation6] sm:$0xff] %v178
    // Predicated region
    $region38: #{tpu_custom_call.1} parent=1 // pred_check
      _
    $region39: #{tpu_custom_call.1} parent=1 // pred_check_branch
      %181 = sbr.rel (0) target = $region41
    $region40: #{tpu_custom_call.1} parent=1 // pred_region
      %183 = vsyncadd [#allocation5], 0
      %s185 = sshll.u32 [#allocation6], 4
      %s186 = int_to_ptr.vmem [resolvable:$true] %s185
      %s187 = sshll.u32 %s7, 4
      %s188 = int_to_ptr.hbm [resolvable:$true] %s187
      %190 = dma.vmem_to_hbm [thread:$0]  %s186, 128, %s188, [#allocation5]
    $region41: #{tpu_custom_call.1} parent=1 // pred_fallthru
      _
    // Predicated region
    $region42: #{tpu_custom_call.1} parent=1 // pred_check
      _
    $region43: #{tpu_custom_call.1} parent=1 // pred_check_branch
      %192 = sbr.rel (0) target = $region45
    $region44: #{tpu_custom_call.1} parent=1 // pred_region
      %194 = dma.done [#allocation5], 128
    $region45: #{tpu_custom_call.1} parent=1 // pred_fallthru
      _
    %195 = vsyncpa [#allocation4], 1
    %196 = vsyncpa [#allocation5], 1

</llo_original>
